<compile_context>
chip_gen: v6e
topology: v6e:2x2x1
jax: 0.10.0
libtpu: 0.0.40
codegen_flags: <defaults>
</compile_context>

<pallas_src>
import functools

import jax
import jax.numpy as jnp
import numpy as np
from jax.experimental import pallas as pl
from jax.experimental.pallas import tpu as pltpu

K = 5          # ConvTranspose2d kernel size
LANES = 128    # TPU vreg lane width


def _phase_tap_matrix(r):
    """A[p, d, k] folding matrix for one spatial axis.

    Output position o = r*n + p (n indexes the ORIGINAL input grid) equals
        sum_{d in 0..2} sum_k A[p, d, k] * w[k] * x[n + d - 1].
    r=2: ConvTranspose2d(k=5, s=2, p=2, output_padding=1).
    r=4: nearest-neighbour 2x upsample folded in front of the same conv.
    """
    A = np.zeros((r, 3, K), np.float32)
    if r == 2:
        taps = {(0, 0): (4,), (0, 1): (2,), (0, 2): (0,),
                (1, 1): (3,), (1, 2): (1,)}
    elif r == 4:
        taps = {(0, 0): (4,), (0, 1): (0, 2),
                (1, 1): (1, 3),
                (2, 1): (2, 4), (2, 2): (0,),
                (3, 1): (3,), (3, 2): (1,)}
    else:
        raise ValueError(f"unsupported expansion factor {r}")
    for (p, d), ks in taps.items():
        for k in ks:
            A[p, d, k] += 1.0
    return jnp.asarray(A)


def _vmem_capacity_bytes():
    """Physical VMEM of the attached chip; conservative (v7x) fallback."""
    try:
        info = pltpu.get_tpu_info()
        cap = getattr(info, "vmem_capacity_bytes", None)
        if cap:
            return int(cap)
    except Exception:
        pass
    return 64 * 1024 * 1024


def _pick_row_tile(hin, win, pcout, cin, itemsize, budget_bytes):
    """Largest divisor of `hin` whose per-step VMEM footprint fits the budget."""
    per_row = win * (4 * pcout                  # f32 accumulator
                     + 2 * itemsize * pcout     # double-buffered output tile
                     + 2 * itemsize * 9 * cin   # im2col patch buffer (+ copy)
                     + 2 * itemsize * cin)      # double-buffered input tile
    cap_rows = max(1, int(budget_bytes // max(1, per_row)))
    best = 1
    for d in range(1, hin + 1):
        if hin % d == 0 and d <= cap_rows:
            best = d
    return best


# -----------------------------------------------------------------------------
# Pallas kernel: phase-decomposed transposed conv (+ per-tile BN statistics, or
# fused ReLU when BatchNorm is disabled).
# -----------------------------------------------------------------------------
def _conv_phase_kernel(x_ref, w_ref, b_ref, *out_refs, with_stats, apply_relu,
                       pack_taps):
    # x_ref : (TH+2, Wp, Cin)   halo-inclusive row tile (original resolution)
    # w_ref : (9*Cin, PCout)    folded phase weights, tap-major / Cin-minor rows
    # b_ref : (1, PCout)        per-(phase, channel) bias, f32
    # out   : y (TH, Win, PCout) [, mu (1, PCout), m2 (1, PCout)]
    if with_stats:
        y_ref, mu_ref, m2_ref = out_refs
    else:
        (y_ref,) = out_refs
    TH, Win, PC = y_ref.shape
    Cin = x_ref.shape[-1]

    x = x_ref[...]
    if pack_taps:
        # im2col: pack the 9 taps into the matmul K dim -> one MXU-filling dot
        # instead of nine shallow K=Cin dots.
        cols = []
        for dy in range(3):
            rows = x[dy:dy + TH]                        # (TH, Wp, Cin)
            for dx in range(3):
                cols.append(rows[:, dx:dx + Win, :])    # (TH, Win, Cin)
        patches = jnp.concatenate(cols, axis=-1).reshape(TH * Win, 9 * Cin)
        acc = jnp.dot(patches, w_ref[...], preferred_element_type=jnp.float32)
    else:
        # Cin alone already fills the MXU K: nine accumulating dots.
        w = w_ref[...].reshape(9, Cin, PC)
        acc = jnp.zeros((TH * Win, PC), jnp.float32)
        tap = 0
        for dy in range(3):
            rows = x[dy:dy + TH]
            for dx in range(3):
                patch = rows[:, dx:dx + Win, :].reshape(TH * Win, Cin)
                acc = acc + jnp.dot(patch, w[tap],
                                    preferred_element_type=jnp.float32)
                tap += 1

    acc = acc + b_ref[...]                              # (1, PCout) broadcast
    if apply_relu:                                      # is_norm=False path
        acc = jnp.maximum(acc, 0.0)

    y = acc.astype(y_ref.dtype)
    y_ref[...] = y.reshape(TH, Win, PC)

    if with_stats:
        # Per-tile mean and CENTERED second moment per (phase, channel) column,
        # computed from the same rounded values the BN affine is applied to.
        # Combined across tiles/phases with Chan's formula in the wrapper.
        ys = y.astype(jnp.float32)
        mu = jnp.mean(ys, axis=0, keepdims=True)
        mu_ref[...] = mu
        m2_ref[...] = jnp.sum((ys - mu) * (ys - mu), axis=0, keepdims=True)


# -----------------------------------------------------------------------------
# Wrapper: weight folding, tiling, pallas_call, BN stat combine, fused epilogue.
# -----------------------------------------------------------------------------
def decoder_block(x, w_pt, bias, gamma, beta, *, is_norm, is_pooling,
                  eps=1e-5, compute_dtype=jnp.bfloat16, tile_rows=None):
    # x    : (N, Cin, H, W)     NCHW like the PyTorch module
    # w_pt : (Cin, Cout, K, K)  ConvTranspose2d weight layout
    # bias / gamma / beta : (Cout,)
    N, Cin, H, W = x.shape
    Cout = w_pt.shape[1]
    r = 4 if is_pooling else 2              # total spatial expansion factor
    P = r * r
    # Lane-dense output: pad Cout so that P*Cout_pad is a multiple of 128.
    cgrp = max(1, LANES // P)
    Cp = ((Cout + cgrp - 1) // cgrp) * cgrp
    PCp = P * Cp
    Hin, Win = H, W                          # kernel runs at ORIGINAL resolution
    Wp = Win + 2
    itemsize = np.dtype(compute_dtype).itemsize

    # ---- fold conv-transpose (and optional nearest 2x upsample) into per-phase
    #      3x3-tap weights (tiny one-off einsum, O(K^2 * Cin * Cout)).
    A = _phase_tap_matrix(r)
    w_pad = jnp.pad(w_pt.astype(jnp.float32),
                    ((0, 0), (0, Cp - Cout), (0, 0), (0, 0)))
    # wf[dy,dx,ci,py,px,co] = sum_{ky,kx} A[py,dy,ky] A[px,dx,kx] w[ci,co,ky,kx]
    wf = jnp.einsum('pik,qjl,cokl->ijcpqo', A, A, w_pad)
    wf = wf.reshape(9 * Cin, PCp).astype(compute_dtype)
    bf = jnp.tile(jnp.pad(bias.astype(jnp.float32), (0, Cp - Cout)),
                  P).reshape(1, PCp)

    # ---- generation-aware tiling / VMEM budget (96 MiB on 128-MiB chips,
    #      48 MiB on v7x's 64 MiB).
    vmem_phys = _vmem_capacity_bytes()
    vmem_limit = int(min(vmem_phys * 3 // 4, 112 * 1024 * 1024))
    if tile_rows is None:
        tile_rows = _pick_row_tile(Hin, Win, PCp, Cin, itemsize,
                                   budget_bytes=vmem_limit // 4)
    assert Hin % tile_rows == 0, (Hin, tile_rows)
    TH = tile_rows
    num_t = Hin // TH
    T = N * num_t

    # ---- NHWC + halo pad of 1; materialise overlapping (TH+2)-row tiles so each
    #      grid step gets its halo in ONE input block (no tiny halo DMAs, no
    #      in-kernel stitching).  Only 2 rows per tile are duplicated.
    xh = jnp.transpose(x, (0, 2, 3, 1)).astype(compute_dtype)
    xpad = jnp.pad(xh, ((0, 0), (1, 1), (1, 1), (0, 0)))
    row_idx = jnp.arange(num_t)[:, None] * TH + jnp.arange(TH + 2)[None, :]
    x_tiles = xpad[:, row_idx].reshape(T, TH + 2, Wp, Cin)

    pack_taps = Cin < 128   # pack 9 taps into K whenever one tap underfills MXU K

    y_shape = jax.ShapeDtypeStruct((T, TH, Win, PCp), compute_dtype)
    y_spec = pl.BlockSpec((None, TH, Win, PCp), lambda i: (i, 0, 0, 0))
    if is_norm:
        stat_shape = jax.ShapeDtypeStruct((T, 1, PCp), jnp.float32)
        stat_spec = pl.BlockSpec((None, 1, PCp), lambda i: (i, 0, 0))
        out_shape = (y_shape, stat_shape, stat_shape)
        out_specs = (y_spec, stat_spec, stat_spec)
    else:
        out_shape = y_shape
        out_specs = y_spec

    cost = pl.CostEstimate(
        flops=int(2 * T * TH * Win * 9 * Cin * PCp),
        transcendentals=0,
        bytes_accessed=int(x_tiles.size * itemsize + wf.size * itemsize
                           + bf.size * 4 + T * TH * Win * PCp * itemsize))

    # TODO(synk): on v7x, mark the grid-invariant wf/bf specs single-buffered
    # (pipeline_mode=pl.Buffered(1)) and evaluate fp8 weights/activations.
    conv = pl.pallas_call(
        functools.partial(_conv_phase_kernel, with_stats=is_norm,
                          apply_relu=not is_norm, pack_taps=pack_taps),
        grid=(T,),
        in_specs=[
            pl.BlockSpec((None, TH + 2, Wp, Cin), lambda i: (i, 0, 0, 0)),
            pl.BlockSpec((9 * Cin, PCp), lambda i: (0, 0)),
            pl.BlockSpec((1, PCp), lambda i: (0, 0)),
        ],
        out_specs=out_specs,
        out_shape=out_shape,
        compiler_params=pltpu.CompilerParams(
            dimension_semantics=("parallel",),
            vmem_limit_bytes=vmem_limit),
        cost_estimate=cost,
    )
    res = conv(x_tiles, wf, bf)

    if is_norm:
        y_t, mu_t, m2_t = res
        # Chan / parallel-variance combination of the per-tile partials
        # (numerically safe vs. E[x^2]-E[x]^2), reduced over tiles AND phases.
        mu_t = mu_t.reshape(T, P, Cp)
        m2_t = m2_t.reshape(T, P, Cp)
        n_tile = TH * Win                       # samples behind every partial
        mean_c = jnp.mean(mu_t, axis=(0, 1))    # equal counts -> plain mean
        m2_c = (jnp.sum(m2_t, axis=(0, 1))
                + n_tile * jnp.sum((mu_t - mean_c) ** 2, axis=(0, 1)))
        var_c = m2_c / (n_tile * T * P)         # biased var (PyTorch training BN)
        gamma_p = jnp.pad(gamma.astype(jnp.float32), (0, Cp - Cout),
                          constant_values=1.0)
        beta_p = jnp.pad(beta.astype(jnp.float32), (0, Cp - Cout),
                         constant_values=0.0)
        inv = gamma_p / jnp.sqrt(var_c + eps)
        scale = jnp.tile(inv, P)                            # (PCp,) phase-major
        shift = jnp.tile(beta_p - mean_c * inv, P)
    else:
        y_t = res

    # ---- fused epilogue (single XLA pass over the compute_dtype kernel output):
    #      [BN affine + ReLU +] depth-to-space + NCHW + f32 cast + pad strip.
    # TODO(synk): writing the pixel-shuffled NCHW layout directly from the conv
    # kernel's stores would remove this last pass, at the cost of an in-kernel
    # lane->major transpose.
    y = y_t.reshape(N, Hin, Win, PCp)
    if is_norm:
        y = jnp.maximum(y.astype(jnp.float32) * scale + shift, 0.0)
    else:
        y = y.astype(jnp.float32)               # ReLU already fused in-kernel
    y = y.reshape(N, Hin, Win, r, r, Cp)
    y = jnp.transpose(y, (0, 5, 1, 3, 2, 4)).reshape(N, Cp, r * Hin, r * Win)
    return y[:, :Cout]


# -----------------------------------------------------------------------------
# Pure-JAX reference (XLA conv) for correctness checks.
# -----------------------------------------------------------------------------
def _reference(x, w_pt, bias, gamma, beta, is_norm, is_pooling, eps=1e-5):
    xh = x.astype(jnp.float32)
    if is_pooling:
        xh = jnp.repeat(jnp.repeat(xh, 2, axis=2), 2, axis=3)
    rhs = jnp.transpose(w_pt[:, :, ::-1, ::-1], (1, 0, 2, 3)).astype(jnp.float32)
    y = jax.lax.conv_general_dilated(
        xh, rhs, window_strides=(1, 1), padding=((2, 3), (2, 3)),
        lhs_dilation=(2, 2), rhs_dilation=(1, 1),
        dimension_numbers=("NCHW", "OIHW", "NCHW"),
        precision=jax.lax.Precision.HIGHEST)
    y = y + bias.reshape(1, -1, 1, 1)
    if is_norm:
        mean = jnp.mean(y, axis=(0, 2, 3), keepdims=True)
        var = jnp.mean((y - mean) ** 2, axis=(0, 2, 3), keepdims=True)
        y = ((y - mean) / jnp.sqrt(var + eps)) * gamma.reshape(1, -1, 1, 1) \
            + beta.reshape(1, -1, 1, 1)
    return jnp.maximum(y, 0.0)


if __name__ == "__main__":
    key = jax.random.PRNGKey(0)
    k1, k2, k3, k4, k5 = jax.random.split(key, 5)

    N, Cin, Cout, H, W = 2, 4, 8, 16, 16

    x = jax.random.normal(k1, (N, Cin, H, W), jnp.float32)
    w_pt = 0.1 * jax.random.normal(k2, (Cin, Cout, K, K), jnp.float32)
    bias = 0.1 * jax.random.normal(k3, (Cout,), jnp.float32)
    gamma = 1.0 + 0.1 * jax.random.normal(k4, (Cout,), jnp.float32)
    beta = 0.1 * jax.random.normal(k5, (Cout,), jnp.float32)

    run = jax.jit(decoder_block, static_argnames=(
        "is_norm", "is_pooling", "eps", "compute_dtype", "tile_rows"))

    configs = [
        # (is_norm, is_pooling, tile_rows); tile_rows=8 forces 2 row tiles so
        # halo tiling + multi-tile BN-stat combination are exercised.
        (True, True, 8),       # P=16 (upsample folded in), PCout=128, BN
        (True, False, None),   # P=4, Cout padded 8->32 for lane-dense stores, BN
        (False, False, None),  # P=4, ReLU fused into the conv epilogue
    ]
    for is_norm, is_pooling, tile_rows in configs:
        r = 4 if is_pooling else 2
        ref = _reference(x, w_pt, bias, gamma, beta, is_norm, is_pooling)

        out_f32 = run(x, w_pt, bias, gamma, beta, is_norm=is_norm,
                      is_pooling=is_pooling, compute_dtype=jnp.float32,
                      tile_rows=tile_rows)
        out_f32 = jax.block_until_ready(out_f32)
        assert out_f32.shape == (N, Cout, r * H, r * W), out_f32.shape
        err = float(jnp.max(jnp.abs(out_f32 - ref)))
        if err > 5e-2:
            raise AssertionError(
                f"f32 mismatch (norm={is_norm}, pool={is_pooling}): {err}")

        out_bf16 = run(x, w_pt, bias, gamma, beta, is_norm=is_norm,
                       is_pooling=is_pooling, compute_dtype=jnp.bfloat16,
                       tile_rows=tile_rows)
        out_bf16 = jax.block_until_ready(out_bf16)
        err_bf = float(jnp.max(jnp.abs(out_bf16 - ref)))
        if err_bf > 1.5e-1:
            raise AssertionError(
                f"bf16 mismatch (norm={is_norm}, pool={is_pooling}): {err_bf}")

    print("KERNEL_OK")
</pallas_src>

<mosaic_0001>
module attributes {stable_mosaic.version = 11 : i64} {
  func.func @_conv_phase_kernel(%arg0: i32, %arg1: memref<1x10x18x4xf32, #tpu.memory_space<vmem>>, %arg2: memref<36x128xf32, #tpu.memory_space<vmem>>, %arg3: memref<1x128xf32, #tpu.memory_space<vmem>>, %arg4: memref<1x8x16x128xf32, #tpu.memory_space<vmem>>, %arg5: memref<1x1x128xf32, #tpu.memory_space<vmem>>, %arg6: memref<1x1x128xf32, #tpu.memory_space<vmem>>) attributes {dimension_semantics = [#tpu.dimension_semantics<parallel>], iteration_bounds = array<i64: 4>, scalar_prefetch = 0 : i64, scratch_operands = 0 : i64, tpu.core_type = #tpu.core_type<tc>, window_params = [{transform_indices = @transform_0, window_bounds = array<i64: 1, 10, 18, 4>}, {pipeline_mode = #tpu.pipeline_mode<synchronous>, transform_indices = @transform_1, window_bounds = array<i64: 36, 128>}, {pipeline_mode = #tpu.pipeline_mode<synchronous>, transform_indices = @transform_2, window_bounds = array<i64: 1, 128>}, {transform_indices = @transform_3, window_bounds = array<i64: 1, 8, 16, 128>}, {transform_indices = @transform_4, window_bounds = array<i64: 1, 1, 128>}, {transform_indices = @transform_5, window_bounds = array<i64: 1, 1, 128>}]} {
    %c0 = arith.constant 0 : index
    %c0_0 = arith.constant 0 : index
    %c0_1 = arith.constant 0 : index
    %c0_2 = arith.constant 0 : index
    %0 = vector.load %arg1[%c0, %c0_0, %c0_1, %c0_2] : memref<1x10x18x4xf32, #tpu.memory_space<vmem>>, vector<1x10x18x4xf32>
    %1 = vector.shape_cast %0 : vector<1x10x18x4xf32> to vector<10x18x4xf32>
    %2 = vector.extract_strided_slice %1 {offsets = [0, 0, 0], sizes = [8, 18, 4], strides = [1, 1, 1]} : vector<10x18x4xf32> to vector<8x18x4xf32>
    %3 = vector.extract_strided_slice %2 {offsets = [0, 0, 0], sizes = [8, 16, 4], strides = [1, 1, 1]} : vector<8x18x4xf32> to vector<8x16x4xf32>
    %4 = vector.extract_strided_slice %2 {offsets = [0, 1, 0], sizes = [8, 16, 4], strides = [1, 1, 1]} : vector<8x18x4xf32> to vector<8x16x4xf32>
    %5 = vector.extract_strided_slice %2 {offsets = [0, 2, 0], sizes = [8, 16, 4], strides = [1, 1, 1]} : vector<8x18x4xf32> to vector<8x16x4xf32>
    %6 = vector.extract_strided_slice %1 {offsets = [1, 0, 0], sizes = [8, 18, 4], strides = [1, 1, 1]} : vector<10x18x4xf32> to vector<8x18x4xf32>
    %7 = vector.extract_strided_slice %6 {offsets = [0, 0, 0], sizes = [8, 16, 4], strides = [1, 1, 1]} : vector<8x18x4xf32> to vector<8x16x4xf32>
    %8 = vector.extract_strided_slice %6 {offsets = [0, 1, 0], sizes = [8, 16, 4], strides = [1, 1, 1]} : vector<8x18x4xf32> to vector<8x16x4xf32>
    %9 = vector.extract_strided_slice %6 {offsets = [0, 2, 0], sizes = [8, 16, 4], strides = [1, 1, 1]} : vector<8x18x4xf32> to vector<8x16x4xf32>
    %10 = vector.extract_strided_slice %1 {offsets = [2, 0, 0], sizes = [8, 18, 4], strides = [1, 1, 1]} : vector<10x18x4xf32> to vector<8x18x4xf32>
    %11 = vector.extract_strided_slice %10 {offsets = [0, 0, 0], sizes = [8, 16, 4], strides = [1, 1, 1]} : vector<8x18x4xf32> to vector<8x16x4xf32>
    %12 = vector.extract_strided_slice %10 {offsets = [0, 1, 0], sizes = [8, 16, 4], strides = [1, 1, 1]} : vector<8x18x4xf32> to vector<8x16x4xf32>
    %13 = vector.extract_strided_slice %10 {offsets = [0, 2, 0], sizes = [8, 16, 4], strides = [1, 1, 1]} : vector<8x18x4xf32> to vector<8x16x4xf32>
    %14 = tpu.concatenate %3, %4, %5, %7, %8, %9, %11, %12, %13 in 2 : vector<8x16x4xf32>, vector<8x16x4xf32>, vector<8x16x4xf32>, vector<8x16x4xf32>, vector<8x16x4xf32>, vector<8x16x4xf32>, vector<8x16x4xf32>, vector<8x16x4xf32>, vector<8x16x4xf32> -> vector<8x16x36xf32>
    %15 = vector.shape_cast %14 : vector<8x16x36xf32> to vector<128x36xf32>
    %c0_3 = arith.constant 0 : index
    %c0_4 = arith.constant 0 : index
    %16 = vector.load %arg2[%c0_3, %c0_4] : memref<36x128xf32, #tpu.memory_space<vmem>>, vector<36x128xf32>
    %cst = arith.constant dense<0.000000e+00> : vector<128x128xf32>
    %17 = tpu.matmul %15, %16, %cst {dimension_numbers = #tpu.dot_dimension_numbers<[1], [0], [0], [1], [0, 0, 1, 1], [], []>} : vector<128x36xf32>, vector<36x128xf32>, vector<128x128xf32> -> vector<128x128xf32>
    %c0_5 = arith.constant 0 : index
    %c0_6 = arith.constant 0 : index
    %18 = vector.load %arg3[%c0_5, %c0_6] : memref<1x128xf32, #tpu.memory_space<vmem>>, vector<1x128xf32>
    %19 = vector.broadcast %18 : vector<1x128xf32> to vector<128x128xf32>
    %20 = arith.addf %17, %19 : vector<128x128xf32>
    %21 = vector.shape_cast %20 : vector<128x128xf32> to vector<8x16x128xf32>
    %c0_7 = arith.constant 0 : index
    %c0_8 = arith.constant 0 : index
    %c0_9 = arith.constant 0 : index
    %c0_10 = arith.constant 0 : index
    %22 = vector.load %arg4[%c0_7, %c0_8, %c0_9, %c0_10] : memref<1x8x16x128xf32, #tpu.memory_space<vmem>>, vector<1x8x16x128xf32>
    %23 = vector.shape_cast %22 : vector<1x8x16x128xf32> to vector<8x16x128xf32>
    %24 = vector.shape_cast %21 : vector<8x16x128xf32> to vector<1x8x16x128xf32>
    tpu.vector_store %arg4[%c0_7, %c0_8, %c0_9, %c0_10], %24 {strides = array<i32>} : memref<1x8x16x128xf32, #tpu.memory_space<vmem>>, vector<1x8x16x128xf32>,
    %cst_11 = arith.constant dense<0.000000e+00> : vector<128xf32>
    %25 = vector.multi_reduction <add>, %20, %cst_11 [0] : vector<128x128xf32> to vector<128xf32>
    %26 = vector.shape_cast %25 : vector<128xf32> to vector<1x128xf32>
    %cst_12 = arith.constant 1.280000e+02 : f32
    %27 = vector.broadcast %cst_12 : f32 to vector<1x128xf32>
    %28 = arith.divf %26, %27 : vector<1x128xf32>
    %c0_13 = arith.constant 0 : index
    %c0_14 = arith.constant 0 : index
    %c0_15 = arith.constant 0 : index
    %29 = vector.load %arg5[%c0_13, %c0_14, %c0_15] : memref<1x1x128xf32, #tpu.memory_space<vmem>>, vector<1x1x128xf32>
    %30 = vector.shape_cast %29 : vector<1x1x128xf32> to vector<1x128xf32>
    %31 = vector.shape_cast %28 : vector<1x128xf32> to vector<1x1x128xf32>
    tpu.vector_store %arg5[%c0_13, %c0_14, %c0_15], %31 {strides = array<i32>} : memref<1x1x128xf32, #tpu.memory_space<vmem>>, vector<1x1x128xf32>,
    %32 = vector.broadcast %28 : vector<1x128xf32> to vector<128x128xf32>
    %33 = arith.subf %20, %32 : vector<128x128xf32>
    %34 = vector.broadcast %28 : vector<1x128xf32> to vector<128x128xf32>
    %35 = arith.subf %20, %34 : vector<128x128xf32>
    %36 = arith.mulf %33, %35 : vector<128x128xf32>
    %cst_16 = arith.constant dense<0.000000e+00> : vector<128xf32>
    %37 = vector.multi_reduction <add>, %36, %cst_16 [0] : vector<128x128xf32> to vector<128xf32>
    %38 = vector.shape_cast %37 : vector<128xf32> to vector<1x128xf32>
    %c0_17 = arith.constant 0 : index
    %c0_18 = arith.constant 0 : index
    %c0_19 = arith.constant 0 : index
    %39 = vector.load %arg6[%c0_17, %c0_18, %c0_19] : memref<1x1x128xf32, #tpu.memory_space<vmem>>, vector<1x1x128xf32>
    %40 = vector.shape_cast %39 : vector<1x1x128xf32> to vector<1x128xf32>
    %41 = vector.shape_cast %38 : vector<1x128xf32> to vector<1x1x128xf32>
    tpu.vector_store %arg6[%c0_17, %c0_18, %c0_19], %41 {strides = array<i32>} : memref<1x1x128xf32, #tpu.memory_space<vmem>>, vector<1x1x128xf32>,
    return
  }
  func.func @transform_0(%arg0: i32) -> (i32, i32, i32, i32) {
    %c0_i32 = arith.constant 0 : i32
    %c0_i32_0 = arith.constant 0 : i32
    %c0_i32_1 = arith.constant 0 : i32
    %c0_i32_2 = arith.constant 0 : i32
    return %arg0, %c0_i32, %c0_i32_0, %c0_i32_1 : i32, i32, i32, i32
  }
  func.func @transform_1(%arg0: i32) -> (i32, i32) {
    %c0_i32 = arith.constant 0 : i32
    %c0_i32_0 = arith.constant 0 : i32
    %c0_i32_1 = arith.constant 0 : i32
    return %c0_i32, %c0_i32_0 : i32, i32
  }
  func.func @transform_2(%arg0: i32) -> (i32, i32) {
    %c0_i32 = arith.constant 0 : i32
    %c0_i32_0 = arith.constant 0 : i32
    %c0_i32_1 = arith.constant 0 : i32
    return %c0_i32, %c0_i32_0 : i32, i32
  }
  func.func @transform_3(%arg0: i32) -> (i32, i32, i32, i32) {
    %c0_i32 = arith.constant 0 : i32
    %c0_i32_0 = arith.constant 0 : i32
    %c0_i32_1 = arith.constant 0 : i32
    %c0_i32_2 = arith.constant 0 : i32
    return %arg0, %c0_i32, %c0_i32_0, %c0_i32_1 : i32, i32, i32, i32
  }
  func.func @transform_4(%arg0: i32) -> (i32, i32, i32) {
    %c0_i32 = arith.constant 0 : i32
    %c0_i32_0 = arith.constant 0 : i32
    %c0_i32_1 = arith.constant 0 : i32
    return %arg0, %c0_i32, %c0_i32_0 : i32, i32, i32
  }
  func.func @transform_5(%arg0: i32) -> (i32, i32, i32) {
    %c0_i32 = arith.constant 0 : i32
    %c0_i32_0 = arith.constant 0 : i32
    %c0_i32_1 = arith.constant 0 : i32
    return %arg0, %c0_i32, %c0_i32_0 : i32, i32, i32
  }
}

</mosaic_0001>

<llo_original>
// kernel: tile.18
$region0: #{tile.18}
  #allocation2 [shape = 's32[1]{0}', space=sflag, size = 0x4, scoped, tag = 'scoped memory for tile.18']
  %s0 = inlined_call_operand.hbm [shape: f32[8], index: 0, kind: input, shape index: {}]
  %s1 = inlined_call_operand.vmem [shape: f32[16,8], index: 1, kind: output, shape index: {}]
  $region1: #{tile.18} parent=0
    #allocation0 [shape = 'u8[512]{0}', space=vmem, size = 0x400, scoped, tag = 'operand span for operand 0']
    #allocation1 [shape = 's32[1]{0}', space=sflag, size = 0x4, scoped, tag = 'scoped memory for tile.18']
    %2 = vsyncpa [#allocation1], 0
    // Predicated region
    $region2: #{tile.18} parent=1 // pred_check
      _
    $region3: #{tile.18} parent=1 // pred_check_branch
      %4 = sbr.rel (0) target = $region5
    $region4: #{tile.18} parent=1 // pred_region
      %s6 = ssub.s32 16, 16
      %7 = vsyncadd [#allocation1], %s6
      %s9 = sshll.u32 [#allocation0], 4
      %s10 = int_to_ptr.vmem [resolvable:$true] %s9
      %12 = dma.hbm_to_vmem [thread:$0]  %s0, 16, %s10, [#allocation1]
    $region5: #{tile.18} parent=1 // pred_fallthru
      _
    // Predicated region
    $region6: #{tile.18} parent=1 // pred_check
      _
    $region7: #{tile.18} parent=1 // pred_check_branch
      %14 = sbr.rel (0) target = $region9
    $region8: #{tile.18} parent=1 // pred_region
      %15 = dma.done [#allocation1], 16
    $region9: #{tile.18} parent=1 // pred_fallthru
      _
    %v16 = vld [vmem:[#allocation0] ss:$0 sm:$0xff]
    %17 = vst [vmem:[%s1] sm:$0xff] %v16
    %s18 = scalar_lea.vmem %s1, 8
    %19 = vst [vmem:[%s18] sm:$0xff] %v16
    %20 = vsyncpa [#allocation1], 1

// kernel: tile.19
$region0: #{tile.19}
  %s0 = inlined_call_operand.vmem [shape: f32[16,8], index: 0, kind: input, shape index: {}]
  %s1 = inlined_call_operand.vmem [shape: f32[1,128], index: 1, kind: output, shape index: {}]
  $region1: #{tile.19} parent=0
    #allocation0 [shape = 'u8[4096]{0}', space=vmem, size = 0x1000, scoped, tag = 'scoped mem for output reshape']
    %v2 = vld [vmem:[%s0] sm:$0x1]
    %vm3 = vcmask 64512
    %4 = vst.msk [vmem:[#allocation0] sm:$0x1] %vm3, %v2
    %s5 = scalar_lea.vmem %s0, 15
    %v6 = vld [vmem:[%s5] sm:$0x1]
    %7 = vrot.lane.b32.xlu0 %v6, 120
    %v8 = vpop.permute.xlu0 %7
    %vm9 = vcmask 1048512
    %10 = vst.msk [vmem:[#allocation0] sm:$0x1] %vm9, %v8
    %s11 = scalar_lea.vmem %s0, 14
    %v12 = vld [vmem:[%s11] sm:$0x1]
    %13 = vrot.lane.b32.xlu0 %v12, 112
    %v14 = vpop.permute.xlu0 %13
    %vm15 = vcmask 982912
    %16 = vst.msk [vmem:[#allocation0] sm:$0x1] %vm15, %v14
    %s17 = scalar_lea.vmem %s0, 13
    %v18 = vld [vmem:[%s17] sm:$0x1]
    %19 = vrot.lane.b32.xlu0 %v18, 104
    %v20 = vpop.permute.xlu0 %19
    %vm21 = vcmask 917312
    %22 = vst.msk [vmem:[#allocation0] sm:$0x1] %vm21, %v20
    %s23 = scalar_lea.vmem %s0, 12
    %v24 = vld [vmem:[%s23] sm:$0x1]
    %25 = vrot.lane.b32.xlu0 %v24, 96
    %v26 = vpop.permute.xlu0 %25
    %vm27 = vcmask 851712
    %28 = vst.msk [vmem:[#allocation0] sm:$0x1] %vm27, %v26
    %s29 = scalar_lea.vmem %s0, 11
    %v30 = vld [vmem:[%s29] sm:$0x1]
    %31 = vrot.lane.b32.xlu0 %v30, 88
    %v32 = vpop.permute.xlu0 %31
    %vm33 = vcmask 786112
    %34 = vst.msk [vmem:[#allocation0] sm:$0x1] %vm33, %v32
    %s35 = scalar_lea.vmem %s0, 10
    %v36 = vld [vmem:[%s35] sm:$0x1]
    %37 = vrot.lane.b32.xlu0 %v36, 80
    %v38 = vpop.permute.xlu0 %37
    %vm39 = vcmask 720512
    %40 = vst.msk [vmem:[#allocation0] sm:$0x1] %vm39, %v38
    %s41 = scalar_lea.vmem %s0, 9
    %v42 = vld [vmem:[%s41] sm:$0x1]
    %43 = vrot.lane.b32.xlu0 %v42, 72
    %v44 = vpop.permute.xlu0 %43
    %vm45 = vcmask 654912
    %46 = vst.msk [vmem:[#allocation0] sm:$0x1] %vm45, %v44
    %s47 = scalar_lea.vmem %s0, 8
    %v48 = vld [vmem:[%s47] sm:$0x1]
    %49 = vrot.lane.b32.xlu0 %v48, 64
    %v50 = vpop.permute.xlu0 %49
    %vm51 = vcmask 589312
    %52 = vst.msk [vmem:[#allocation0] sm:$0x1] %vm51, %v50
    %s53 = scalar_lea.vmem %s0, 7
    %v54 = vld [vmem:[%s53] sm:$0x1]
    %55 = vrot.lane.b32.xlu0 %v54, 56
    %v56 = vpop.permute.xlu0 %55
    %vm57 = vcmask 523712
    %58 = vst.msk [vmem:[#allocation0] sm:$0x1] %vm57, %v56
    %s59 = scalar_lea.vmem %s0, 6
    %v60 = vld [vmem:[%s59] sm:$0x1]
    %61 = vrot.lane.b32.xlu0 %v60, 48
    %v62 = vpop.permute.xlu0 %61
    %vm63 = vcmask 458112
    %64 = vst.msk [vmem:[#allocation0] sm:$0x1] %vm63, %v62
    %s65 = scalar_lea.vmem %s0, 5
    %v66 = vld [vmem:[%s65] sm:$0x1]
    %67 = vrot.lane.b32.xlu0 %v66, 40
    %v68 = vpop.permute.xlu0 %67
    %vm69 = vcmask 392512
    %70 = vst.msk [vmem:[#allocation0] sm:$0x1] %vm69, %v68
    %s71 = scalar_lea.vmem %s0, 4
    %v72 = vld [vmem:[%s71] sm:$0x1]
    %73 = vrot.lane.b32.xlu0 %v72, 32
    %v74 = vpop.permute.xlu0 %73
    %vm75 = vcmask 326912
    %76 = vst.msk [vmem:[#allocation0] sm:$0x1] %vm75, %v74
    %s77 = scalar_lea.vmem %s0, 3
    %v78 = vld [vmem:[%s77] sm:$0x1]
    %79 = vrot.lane.b32.xlu0 %v78, 24
    %v80 = vpop.permute.xlu0 %79
    %vm81 = vcmask 261312
    %82 = vst.msk [vmem:[#allocation0] sm:$0x1] %vm81, %v80
    %s83 = scalar_lea.vmem %s0, 2
    %v84 = vld [vmem:[%s83] sm:$0x1]
    %85 = vrot.lane.b32.xlu0 %v84, 16
    %v86 = vpop.permute.xlu0 %85
    %vm87 = vcmask 195712
    %88 = vst.msk [vmem:[#allocation0] sm:$0x1] %vm87, %v86
    %s89 = scalar_lea.vmem %s0, 1
    %v90 = vld [vmem:[%s89] sm:$0x1]
    %91 = vrot.lane.b32.xlu0 %v90, 8
    %v92 = vpop.permute.xlu0 %91
    %vm93 = vcmask 130112
    %94 = vst.msk [vmem:[#allocation0] sm:$0x1] %vm93, %v92
    %s96 = sshll.u32 1, 1
    %s97 = ssub.s32 %s96, 1
    %v99 = vld [vmem:[#allocation0] sm:%s97]
    %s100 = sshll.u32 1, 1
    %s101 = ssub.s32 %s100, 1
    %102 = vst [vmem:[%s1] sm:%s101] %v99

// kernel: decoder_block.1
$region0: #{decoder_block.1}
  #allocation0 [shape = 'u32[]', space=smem, size = 0x4, offset = 0x4, fixed_abs, tag = 'smem constant byte address 0x4 - core index']
  #allocation1 [shape = 'u32[144,128]{1,0:T(1,128)}', space=vmem, size = 0x12000, scoped, tag = 'internal scratch']
  %s0 = inlined_call_operand.vmem [shape: f32[4,10,18,4], index: 0, kind: input, shape index: {}]
  %s1 = inlined_call_operand.vmem [shape: f32[36,128], index: 1, kind: input, shape index: {}]
  %s2 = inlined_call_operand.vmem [shape: f32[1,128], index: 2, kind: input, shape index: {}]
  %s3 = inlined_call_operand.vmem [shape: f32[4,8,16,128], index: 3, kind: output, shape index: {0}]
  %s4 = inlined_call_operand.vmem [shape: f32[4,1,128], index: 4, kind: output, shape index: {1}]
  %s5 = inlined_call_operand.vmem [shape: f32[4,1,128], index: 5, kind: output, shape index: {2}]
  %6 = xla_tuple %s3, %s4, %s5
  %s7 = sld [smem:[#allocation0]]
  $region61: #{decoder_block.1} parent=0
    _
  %s9 = ssub.s32 1, %s7
  %s10 = scalar_select 0, %s9, %s7
  loop: start=0, step=1, limit=6
  $region2: #{decoder_block.1} parent=0 // loop_pre_header
    _
  $region3: #{decoder_block.1} parent=0 // loop_header
    %s12 = sphi 0, %s16
    %p13 = scmp.ge.s32.totalorder %s12, 6
    %s22 = sphi 0, %s24
    %s25 = sphi 0, %s22
    %s26 = sphi 0, %s25
    %s42 = sphi 0, %s26
    %s46 = sphi 0, %s46
    %s48 = sphi 0, %s46
    %s49 = sphi 0, %s48
    %s63 = sphi 0, %s49
    %s67 = sphi 0, %s67
    %s69 = sphi 0, %s67
    %s70 = sphi 0, %s69
    %s84 = sphi 0, %s70
    %s90 = sphi 0, %s92
    %s93 = sphi 0, %s90
    %s94 = sphi 0, %s93
    %s110 = sphi 0, %s94
    %s116 = sphi 0, %s118
    %s119 = sphi 0, %s116
    %s120 = sphi 0, %s119
    %s136 = sphi 0, %s120
    %s142 = sphi 0, %s144
    %s145 = sphi 0, %s142
    %s146 = sphi 0, %s145
    %s162 = sphi 0, %s146
  $region4: #{decoder_block.1} parent=0 // loop_header_branch
    %15 = sbr.rel (%p13) target = $region8
  $region5: #{decoder_block.1} parent=0 // loop_body
    %s17 = ssub.s32 %s12, 1
    %s18 = ssub.s32 %s12, 2
    %s19 = sadd.s32 %s12, 1
    %s20 = ssub.s32 %s12, %s19
    %p21 = scmp.eq.s32.totalorder %s20, 0
    %s23 = sadd.s32 %s22, 1
    %s24 = scalar_select %p21, %s22, %s23
    %p27 = pneg %p21
    %p28 = scmp.eq.s32.totalorder %s12, 3
    %p29 = por %p27, %p28
    %p30 = scmp.ne.s32.totalorder %s22, %s25
    %p31 = scmp.eq.s32.totalorder %s12, 0
    %p32 = por %p30, %p31
    %p33 = scmp.ne.s32.totalorder %s22, %s25
    %p34 = scmp.eq.s32.totalorder %s17, 3
    %p35 = por %p33, %p34
    %p36 = scmp.ne.s32.totalorder %s25, %s26
    %p37 = scmp.eq.s32.totalorder %s17, 0
    %p38 = por %p36, %p37
    %p39 = scmp.ne.s32.totalorder %s25, %s26
    %p40 = scmp.eq.s32.totalorder %s18, 3
    %p41 = por %p39, %p40
    %p43 = scmp.ne.s32.totalorder %s26, %s42
    %p44 = scmp.eq.s32.totalorder %s18, 0
    %p45 = por %p43, %p44
    %s47 = sadd.s32 %s46, 1
    %p50 = scmp.eq.s32.totalorder %s12, 3
    %p51 = scmp.ne.s32.totalorder %s46, %s48
    %p52 = scmp.eq.s32.totalorder %s12, 0
    %p53 = por %p51, %p52
    %p54 = scmp.ne.s32.totalorder %s46, %s48
    %p55 = scmp.eq.s32.totalorder %s17, 3
    %p56 = por %p54, %p55
    %p57 = scmp.ne.s32.totalorder %s48, %s49
    %p58 = scmp.eq.s32.totalorder %s17, 0
    %p59 = por %p57, %p58
    %p60 = scmp.ne.s32.totalorder %s48, %s49
    %p61 = scmp.eq.s32.totalorder %s18, 3
    %p62 = por %p60, %p61
    %p64 = scmp.ne.s32.totalorder %s49, %s63
    %p65 = scmp.eq.s32.totalorder %s18, 0
    %p66 = por %p64, %p65
    %s68 = sadd.s32 %s67, 1
    %p71 = scmp.eq.s32.totalorder %s12, 3
    %p72 = scmp.ne.s32.totalorder %s67, %s69
    %p73 = scmp.eq.s32.totalorder %s12, 0
    %p74 = por %p72, %p73
    %p75 = scmp.ne.s32.totalorder %s67, %s69
    %p76 = scmp.eq.s32.totalorder %s17, 3
    %p77 = por %p75, %p76
    %p78 = scmp.ne.s32.totalorder %s69, %s70
    %p79 = scmp.eq.s32.totalorder %s17, 0
    %p80 = por %p78, %p79
    %p81 = scmp.ne.s32.totalorder %s69, %s70
    %p82 = scmp.eq.s32.totalorder %s18, 3
    %p83 = por %p81, %p82
    %p85 = scmp.ne.s32.totalorder %s70, %s84
    %p86 = scmp.eq.s32.totalorder %s18, 0
    %p87 = por %p85, %p86
    %s88 = ssub.s32 %s12, %s19
    %p89 = scmp.eq.s32.totalorder %s88, 0
    %s91 = sadd.s32 %s90, 1
    %s92 = scalar_select %p89, %s90, %s91
    %p95 = pneg %p89
    %p96 = scmp.eq.s32.totalorder %s12, 3
    %p97 = por %p95, %p96
    %p98 = scmp.ne.s32.totalorder %s90, %s93
    %p99 = scmp.eq.s32.totalorder %s12, 0
    %p100 = por %p98, %p99
    %p101 = scmp.ne.s32.totalorder %s90, %s93
    %p102 = scmp.eq.s32.totalorder %s17, 3
    %p103 = por %p101, %p102
    %p104 = scmp.ne.s32.totalorder %s93, %s94
    %p105 = scmp.eq.s32.totalorder %s17, 0
    %p106 = por %p104, %p105
    %p107 = scmp.ne.s32.totalorder %s93, %s94
    %p108 = scmp.eq.s32.totalorder %s18, 3
    %p109 = por %p107, %p108
    %p111 = scmp.ne.s32.totalorder %s94, %s110
    %p112 = scmp.eq.s32.totalorder %s18, 0
    %p113 = por %p111, %p112
    %s114 = ssub.s32 %s12, %s19
    %p115 = scmp.eq.s32.totalorder %s114, 0
    %s117 = sadd.s32 %s116, 1
    %s118 = scalar_select %p115, %s116, %s117
    %p121 = pneg %p115
    %p122 = scmp.eq.s32.totalorder %s12, 3
    %p123 = por %p121, %p122
    %p124 = scmp.ne.s32.totalorder %s116, %s119
    %p125 = scmp.eq.s32.totalorder %s12, 0
    %p126 = por %p124, %p125
    %p127 = scmp.ne.s32.totalorder %s116, %s119
    %p128 = scmp.eq.s32.totalorder %s17, 3
    %p129 = por %p127, %p128
    %p130 = scmp.ne.s32.totalorder %s119, %s120
    %p131 = scmp.eq.s32.totalorder %s17, 0
    %p132 = por %p130, %p131
    %p133 = scmp.ne.s32.totalorder %s119, %s120
    %p134 = scmp.eq.s32.totalorder %s18, 3
    %p135 = por %p133, %p134
    %p137 = scmp.ne.s32.totalorder %s120, %s136
    %p138 = scmp.eq.s32.totalorder %s18, 0
    %p139 = por %p137, %p138
    %s140 = ssub.s32 %s12, %s19
    %p141 = scmp.eq.s32.totalorder %s140, 0
    %s143 = sadd.s32 %s142, 1
    %s144 = scalar_select %p141, %s142, %s143
    %p147 = pneg %p141
    %p148 = scmp.eq.s32.totalorder %s12, 3
    %p149 = por %p147, %p148
    %p150 = scmp.ne.s32.totalorder %s142, %s145
    %p151 = scmp.eq.s32.totalorder %s12, 0
    %p152 = por %p150, %p151
    %p153 = scmp.ne.s32.totalorder %s142, %s145
    %p154 = scmp.eq.s32.totalorder %s17, 3
    %p155 = por %p153, %p154
    %p156 = scmp.ne.s32.totalorder %s145, %s146
    %p157 = scmp.eq.s32.totalorder %s17, 0
    %p158 = por %p156, %p157
    %p159 = scmp.ne.s32.totalorder %s145, %s146
    %p160 = scmp.eq.s32.totalorder %s18, 3
    %p161 = por %p159, %p160
    %p163 = scmp.ne.s32.totalorder %s146, %s162
    %p164 = scmp.eq.s32.totalorder %s18, 0
    %p165 = por %p163, %p164
    %p166 = scmp.le.s32.totalorder 1, %s12
    %p167 = scmp.lt.s32.totalorder %s12, 5
    %p168 = pnand %p166, %p167
    %p169 = pneg %p168
    // Predicated region
    $region9: #{decoder_block.1} parent=5 // pred_check
      _
    $region10: #{decoder_block.1} parent=5 // pred_check_branch
      %171 = sbr.rel (%p168) target = $region12
    $region11: #{decoder_block.1} parent=5 // pred_region
      %s172 = ssub.s32 %s12, 1
      // Predicated region
      $region13: #{decoder_block.1} parent=11 // pred_check
        %p173 = pneg %p59
      $region14: #{decoder_block.1} parent=11 // pred_check_branch
        %175 = sbr.rel (%p173) target = $region16
      $region15: #{decoder_block.1} parent=11 // pred_region
        _
      $region16: #{decoder_block.1} parent=11 // pred_fallthru
        _
      // Predicated region
      $region17: #{decoder_block.1} parent=11 // pred_check
        %p176 = pneg %p80
      $region18: #{decoder_block.1} parent=11 // pred_check_branch
        %178 = sbr.rel (%p176) target = $region20
      $region19: #{decoder_block.1} parent=11 // pred_region
        _
      $region20: #{decoder_block.1} parent=11 // pred_fallthru
        _
    $region12: #{decoder_block.1} parent=5 // pred_fallthru
      _
    %p179 = scmp.lt.s32.totalorder %s12, 4
    // Predicated region
    $region21: #{decoder_block.1} parent=5 // pred_check
      %p180 = pneg %p179
    $region22: #{decoder_block.1} parent=5 // pred_check_branch
      %182 = sbr.rel (%p180) target = $region24
    $region23: #{decoder_block.1} parent=5 // pred_region
      // Predicated region
      $region25: #{decoder_block.1} parent=23 // pred_check
        %p183 = pneg %p32
      $region26: #{decoder_block.1} parent=23 // pred_check_branch
        %185 = sbr.rel (%p183) target = $region28
      $region27: #{decoder_block.1} parent=23 // pred_region
        %p186 = scmp.lt.s32.totalorder %s12, 3
        %s187 = scalar_select %p186, %s12, 3
        %s188 = smul.addr %s187, 30
        %s189 = smul.addr %s188, 8
        %s190 = scalar_lea.vmem %s0, %s189
      $region28: #{decoder_block.1} parent=23 // pred_fallthru
        _
    $region24: #{decoder_block.1} parent=5 // pred_fallthru
      _
    %p191 = scmp.le.s32.totalorder 1, %s12
    %p192 = scmp.lt.s32.totalorder %s12, 5
    %p193 = pnand %p191, %p192
    %p194 = pneg %p193
    // Predicated region
    $region29: #{decoder_block.1} parent=5 // pred_check
      _
    $region30: #{decoder_block.1} parent=5 // pred_check_branch
      %196 = sbr.rel (%p193) target = $region32
    $region31: #{decoder_block.1} parent=5 // pred_region
      %s197 = ssub.s32 %s12, 1
      %p198 = scmp.lt.s32.totalorder %s17, 3
      %s199 = scalar_select %p198, %s17, 3
      %s200 = smul.addr %s199, 30
      %s201 = smul.addr %s200, 8
      %s202 = scalar_lea.vmem %s0, %s201
      %p203 = pneg %p38
      %p204 = pneg %p35
      %p205 = pneg %p59
      %p206 = pneg %p56
      %p207 = pneg %p80
      %p208 = pneg %p77
      %p209 = pneg %p106
      %p210 = pneg %p103
      %p211 = scmp.lt.s32.totalorder %s17, 3
      %s212 = scalar_select %p211, %s17, 3
      %s213 = smul.addr %s212, 16
      %s214 = smul.addr %s213, 8
      %s215 = scalar_lea.vmem %s3, %s214
      %p216 = pneg %p132
      %p217 = pneg %p129
      %p218 = scmp.lt.s32.totalorder %s17, 3
      %s219 = scalar_select %p218, %s17, 3
      %s220 = scalar_lea.vmem %s4, %s219
      %p221 = pneg %p158
      %p222 = pneg %p155
      %p223 = scmp.lt.s32.totalorder %s17, 3
      %s224 = scalar_select %p223, %s17, 3
      %s225 = scalar_lea.vmem %s5, %s224
      %p226 = scmp.lt.s32.totalorder %s17, 3
      %s227 = scalar_select %p226, %s17, 3
      %s228 = smul.addr %s227, 30
      %s229 = smul.addr %s228, 8
      %s230 = scalar_lea.vmem %s0, %s229
      %p231 = scmp.lt.s32.totalorder %s17, 3
      %s232 = scalar_select %p231, %s17, 3
      %s233 = smul.addr %s232, 16
      %s234 = smul.addr %s233, 8
      %s235 = scalar_lea.vmem %s3, %s234
      %p236 = scmp.lt.s32.totalorder %s17, 3
      %s237 = scalar_select %p236, %s17, 3
      %s238 = scalar_lea.vmem %s4, %s237
      %p239 = scmp.lt.s32.totalorder %s17, 3
      %s240 = scalar_select %p239, %s17, 3
      %s241 = scalar_lea.vmem %s5, %s240
      %v242 = vld [vmem:[%s230] sm:$0xff]
      %v243 = vld [vmem:[%s230 + $0x8] sm:$0xff]
      %v244 = vld [vmem:[%s230 + $0x10] sm:$0x3]
      %v245 = vld [vmem:[%s230 + $0x18] sm:$0xff]
      %v246 = vld [vmem:[%s230 + $0x20] sm:$0xff]
      %v247 = vld [vmem:[%s230 + $0x28] sm:$0x3]
      %v248 = vld [vmem:[%s230 + $0x30] sm:$0xff]
      %v249 = vld [vmem:[%s230 + $0x38] sm:$0xff]
      %v250 = vld [vmem:[%s230 + $0x40] sm:$0x3]
      %v251 = vld [vmem:[%s230 + $0x48] sm:$0xff]
      %v252 = vld [vmem:[%s230 + $0x50] sm:$0xff]
      %v253 = vld [vmem:[%s230 + $0x58] sm:$0x3]
      %v254 = vld [vmem:[%s230 + $0x60] sm:$0xff]
      %v255 = vld [vmem:[%s230 + $0x68] sm:$0xff]
      %v256 = vld [vmem:[%s230 + $0x70] sm:$0x3]
      %v257 = vld [vmem:[%s230 + $0x78] sm:$0xff]
      %v258 = vld [vmem:[%s230 + $0x80] sm:$0xff]
      %v259 = vld [vmem:[%s230 + $0x88] sm:$0x3]
      %v260 = vld [vmem:[%s230 + $0x90] sm:$0xff]
      %v261 = vld [vmem:[%s230 + $0x98] sm:$0xff]
      %v262 = vld [vmem:[%s230 + $0xa0] sm:$0x3]
      %v263 = vld [vmem:[%s230 + $0xa8] sm:$0xff]
      %v264 = vld [vmem:[%s230 + $0xb0] sm:$0xff]
      %v265 = vld [vmem:[%s230 + $0xb8] sm:$0x3]
      %v266 = vld [vmem:[%s230 + $0xc0] sm:$0xff]
      %v267 = vld [vmem:[%s230 + $0xc8] sm:$0xff]
      %v268 = vld [vmem:[%s230 + $0xd0] sm:$0x3]
      %v269 = vld [vmem:[%s230 + $0xd8] sm:$0xff]
      %v270 = vld [vmem:[%s230 + $0xe0] sm:$0xff]
      %v271 = vld [vmem:[%s230 + $0xe8] sm:$0x3]
      %vm296 = vcmask 1046528
      %v297 = vrot.slane %v242, 1
      %v298 = vrot.slane %v243, 1
      %v299 = vsel %vm296, %v297, %v298
      %v300 = vrot.slane %v244, 1
      %v301 = vsel %vm296, %v298, %v300
      %v302 = vrot.slane %v245, 1
      %v303 = vrot.slane %v246, 1
      %v304 = vsel %vm296, %v302, %v303
      %v305 = vrot.slane %v247, 1
      %v306 = vsel %vm296, %v303, %v305
      %v307 = vrot.slane %v248, 1
      %v308 = vrot.slane %v249, 1
      %v309 = vsel %vm296, %v307, %v308
      %v310 = vrot.slane %v250, 1
      %v311 = vsel %vm296, %v308, %v310
      %v312 = vrot.slane %v251, 1
      %v313 = vrot.slane %v252, 1
      %v314 = vsel %vm296, %v312, %v313
      %v315 = vrot.slane %v253, 1
      %v316 = vsel %vm296, %v313, %v315
      %v317 = vrot.slane %v254, 1
      %v318 = vrot.slane %v255, 1
      %v319 = vsel %vm296, %v317, %v318
      %v320 = vrot.slane %v256, 1
      %v321 = vsel %vm296, %v318, %v320
      %v322 = vrot.slane %v257, 1
      %v323 = vrot.slane %v258, 1
      %v324 = vsel %vm296, %v322, %v323
      %v325 = vrot.slane %v259, 1
      %v326 = vsel %vm296, %v323, %v325
      %v327 = vrot.slane %v260, 1
      %v328 = vrot.slane %v261, 1
      %v329 = vsel %vm296, %v327, %v328
      %v330 = vrot.slane %v262, 1
      %v331 = vsel %vm296, %v328, %v330
      %v332 = vrot.slane %v263, 1
      %v333 = vrot.slane %v264, 1
      %v334 = vsel %vm296, %v332, %v333
      %v335 = vrot.slane %v265, 1
      %v336 = vsel %vm296, %v333, %v335
      %337 = vrot.lane.b32.xlu0 %v299, 4
      %v338 = vpop.permute.xlu0 %337
      %339 = vrot.lane.b32.xlu0 %v301, 4
      %v340 = vpop.permute.xlu0 %339
      %341 = vrot.lane.b32.xlu0 %v304, 4
      %v342 = vpop.permute.xlu0 %341
      %343 = vrot.lane.b32.xlu0 %v306, 4
      %v344 = vpop.permute.xlu0 %343
      %345 = vrot.lane.b32.xlu0 %v309, 4
      %v346 = vpop.permute.xlu0 %345
      %347 = vrot.lane.b32.xlu0 %v311, 4
      %v348 = vpop.permute.xlu0 %347
      %349 = vrot.lane.b32.xlu0 %v314, 4
      %v350 = vpop.permute.xlu0 %349
      %351 = vrot.lane.b32.xlu0 %v316, 4
      %v352 = vpop.permute.xlu0 %351
      %353 = vrot.lane.b32.xlu0 %v319, 4
      %v354 = vpop.permute.xlu0 %353
      %355 = vrot.lane.b32.xlu0 %v321, 4
      %v356 = vpop.permute.xlu0 %355
      %357 = vrot.lane.b32.xlu0 %v324, 4
      %v358 = vpop.permute.xlu0 %357
      %359 = vrot.lane.b32.xlu0 %v326, 4
      %v360 = vpop.permute.xlu0 %359
      %361 = vrot.lane.b32.xlu0 %v329, 4
      %v362 = vpop.permute.xlu0 %361
      %363 = vrot.lane.b32.xlu0 %v331, 4
      %v364 = vpop.permute.xlu0 %363
      %365 = vrot.lane.b32.xlu0 %v334, 4
      %v366 = vpop.permute.xlu0 %365
      %367 = vrot.lane.b32.xlu0 %v336, 4
      %v368 = vpop.permute.xlu0 %367
      %vm385 = vcmask 1045504
      %v386 = vrot.slane %v242, 2
      %v387 = vrot.slane %v243, 2
      %v388 = vsel %vm385, %v386, %v387
      %v389 = vrot.slane %v244, 2
      %v390 = vsel %vm385, %v387, %v389
      %v391 = vrot.slane %v245, 2
      %v392 = vrot.slane %v246, 2
      %v393 = vsel %vm385, %v391, %v392
      %v394 = vrot.slane %v247, 2
      %v395 = vsel %vm385, %v392, %v394
      %v396 = vrot.slane %v248, 2
      %v397 = vrot.slane %v249, 2
      %v398 = vsel %vm385, %v396, %v397
      %v399 = vrot.slane %v250, 2
      %v400 = vsel %vm385, %v397, %v399
      %v401 = vrot.slane %v251, 2
      %v402 = vrot.slane %v252, 2
      %v403 = vsel %vm385, %v401, %v402
      %v404 = vrot.slane %v253, 2
      %v405 = vsel %vm385, %v402, %v404
      %v406 = vrot.slane %v254, 2
      %v407 = vrot.slane %v255, 2
      %v408 = vsel %vm385, %v406, %v407
      %v409 = vrot.slane %v256, 2
      %v410 = vsel %vm385, %v407, %v409
      %v411 = vrot.slane %v257, 2
      %v412 = vrot.slane %v258, 2
      %v413 = vsel %vm385, %v411, %v412
      %v414 = vrot.slane %v259, 2
      %v415 = vsel %vm385, %v412, %v414
      %v416 = vrot.slane %v260, 2
      %v417 = vrot.slane %v261, 2
      %v418 = vsel %vm385, %v416, %v417
      %v419 = vrot.slane %v262, 2
      %v420 = vsel %vm385, %v417, %v419
      %v421 = vrot.slane %v263, 2
      %v422 = vrot.slane %v264, 2
      %v423 = vsel %vm385, %v421, %v422
      %v424 = vrot.slane %v265, 2
      %v425 = vsel %vm385, %v422, %v424
      %426 = vrot.lane.b32.xlu0 %v388, 8
      %v427 = vpop.permute.xlu0 %426
      %428 = vrot.lane.b32.xlu0 %v390, 8
      %v429 = vpop.permute.xlu0 %428
      %430 = vrot.lane.b32.xlu0 %v393, 8
      %v431 = vpop.permute.xlu0 %430
      %432 = vrot.lane.b32.xlu0 %v395, 8
      %v433 = vpop.permute.xlu0 %432
      %434 = vrot.lane.b32.xlu0 %v398, 8
      %v435 = vpop.permute.xlu0 %434
      %436 = vrot.lane.b32.xlu0 %v400, 8
      %v437 = vpop.permute.xlu0 %436
      %438 = vrot.lane.b32.xlu0 %v403, 8
      %v439 = vpop.permute.xlu0 %438
      %440 = vrot.lane.b32.xlu0 %v405, 8
      %v441 = vpop.permute.xlu0 %440
      %442 = vrot.lane.b32.xlu0 %v408, 8
      %v443 = vpop.permute.xlu0 %442
      %444 = vrot.lane.b32.xlu0 %v410, 8
      %v445 = vpop.permute.xlu0 %444
      %446 = vrot.lane.b32.xlu0 %v413, 8
      %v447 = vpop.permute.xlu0 %446
      %448 = vrot.lane.b32.xlu0 %v415, 8
      %v449 = vpop.permute.xlu0 %448
      %450 = vrot.lane.b32.xlu0 %v418, 8
      %v451 = vpop.permute.xlu0 %450
      %452 = vrot.lane.b32.xlu0 %v420, 8
      %v453 = vpop.permute.xlu0 %452
      %454 = vrot.lane.b32.xlu0 %v423, 8
      %v455 = vpop.permute.xlu0 %454
      %456 = vrot.lane.b32.xlu0 %v425, 8
      %v457 = vpop.permute.xlu0 %456
      %476 = vrot.lane.b32.xlu0 %v245, 12
      %v477 = vpop.permute.xlu0 %476
      %478 = vrot.lane.b32.xlu0 %v246, 12
      %v479 = vpop.permute.xlu0 %478
      %480 = vrot.lane.b32.xlu0 %v248, 12
      %v481 = vpop.permute.xlu0 %480
      %482 = vrot.lane.b32.xlu0 %v249, 12
      %v483 = vpop.permute.xlu0 %482
      %484 = vrot.lane.b32.xlu0 %v251, 12
      %v485 = vpop.permute.xlu0 %484
      %486 = vrot.lane.b32.xlu0 %v252, 12
      %v487 = vpop.permute.xlu0 %486
      %488 = vrot.lane.b32.xlu0 %v254, 12
      %v489 = vpop.permute.xlu0 %488
      %490 = vrot.lane.b32.xlu0 %v255, 12
      %v491 = vpop.permute.xlu0 %490
      %492 = vrot.lane.b32.xlu0 %v257, 12
      %v493 = vpop.permute.xlu0 %492
      %494 = vrot.lane.b32.xlu0 %v258, 12
      %v495 = vpop.permute.xlu0 %494
      %496 = vrot.lane.b32.xlu0 %v260, 12
      %v497 = vpop.permute.xlu0 %496
      %498 = vrot.lane.b32.xlu0 %v261, 12
      %v499 = vpop.permute.xlu0 %498
      %500 = vrot.lane.b32.xlu0 %v263, 12
      %v501 = vpop.permute.xlu0 %500
      %502 = vrot.lane.b32.xlu0 %v264, 12
      %v503 = vpop.permute.xlu0 %502
      %504 = vrot.lane.b32.xlu0 %v266, 12
      %v505 = vpop.permute.xlu0 %504
      %506 = vrot.lane.b32.xlu0 %v267, 12
      %v507 = vpop.permute.xlu0 %506
      %v525 = vrot.slane %v266, 1
      %v526 = vrot.slane %v267, 1
      %v527 = vsel %vm296, %v525, %v526
      %v528 = vrot.slane %v268, 1
      %v529 = vsel %vm296, %v526, %v528
      %530 = vrot.lane.b32.xlu0 %v304, 16
      %v531 = vpop.permute.xlu0 %530
      %532 = vrot.lane.b32.xlu0 %v306, 16
      %v533 = vpop.permute.xlu0 %532
      %534 = vrot.lane.b32.xlu0 %v309, 16
      %v535 = vpop.permute.xlu0 %534
      %536 = vrot.lane.b32.xlu0 %v311, 16
      %v537 = vpop.permute.xlu0 %536
      %538 = vrot.lane.b32.xlu0 %v314, 16
      %v539 = vpop.permute.xlu0 %538
      %540 = vrot.lane.b32.xlu0 %v316, 16
      %v541 = vpop.permute.xlu0 %540
      %542 = vrot.lane.b32.xlu0 %v319, 16
      %v543 = vpop.permute.xlu0 %542
      %544 = vrot.lane.b32.xlu0 %v321, 16
      %v545 = vpop.permute.xlu0 %544
      %546 = vrot.lane.b32.xlu0 %v324, 16
      %v547 = vpop.permute.xlu0 %546
      %548 = vrot.lane.b32.xlu0 %v326, 16
      %v549 = vpop.permute.xlu0 %548
      %550 = vrot.lane.b32.xlu0 %v329, 16
      %v551 = vpop.permute.xlu0 %550
      %552 = vrot.lane.b32.xlu0 %v331, 16
      %v553 = vpop.permute.xlu0 %552
      %554 = vrot.lane.b32.xlu0 %v334, 16
      %v555 = vpop.permute.xlu0 %554
      %556 = vrot.lane.b32.xlu0 %v336, 16
      %v557 = vpop.permute.xlu0 %556
      %558 = vrot.lane.b32.xlu0 %v527, 16
      %v559 = vpop.permute.xlu0 %558
      %560 = vrot.lane.b32.xlu0 %v529, 16
      %v561 = vpop.permute.xlu0 %560
      %v578 = vrot.slane %v266, 2
      %v579 = vrot.slane %v267, 2
      %v580 = vsel %vm385, %v578, %v579
      %v581 = vrot.slane %v268, 2
      %v582 = vsel %vm385, %v579, %v581
      %583 = vrot.lane.b32.xlu0 %v393, 20
      %v584 = vpop.permute.xlu0 %583
      %585 = vrot.lane.b32.xlu0 %v395, 20
      %v586 = vpop.permute.xlu0 %585
      %587 = vrot.lane.b32.xlu0 %v398, 20
      %v588 = vpop.permute.xlu0 %587
      %589 = vrot.lane.b32.xlu0 %v400, 20
      %v590 = vpop.permute.xlu0 %589
      %591 = vrot.lane.b32.xlu0 %v403, 20
      %v592 = vpop.permute.xlu0 %591
      %593 = vrot.lane.b32.xlu0 %v405, 20
      %v594 = vpop.permute.xlu0 %593
      %595 = vrot.lane.b32.xlu0 %v408, 20
      %v596 = vpop.permute.xlu0 %595
      %597 = vrot.lane.b32.xlu0 %v410, 20
      %v598 = vpop.permute.xlu0 %597
      %599 = vrot.lane.b32.xlu0 %v413, 20
      %v600 = vpop.permute.xlu0 %599
      %601 = vrot.lane.b32.xlu0 %v415, 20
      %v602 = vpop.permute.xlu0 %601
      %603 = vrot.lane.b32.xlu0 %v418, 20
      %v604 = vpop.permute.xlu0 %603
      %605 = vrot.lane.b32.xlu0 %v420, 20
      %v606 = vpop.permute.xlu0 %605
      %607 = vrot.lane.b32.xlu0 %v423, 20
      %v608 = vpop.permute.xlu0 %607
      %609 = vrot.lane.b32.xlu0 %v425, 20
      %v610 = vpop.permute.xlu0 %609
      %611 = vrot.lane.b32.xlu0 %v580, 20
      %v612 = vpop.permute.xlu0 %611
      %613 = vrot.lane.b32.xlu0 %v582, 20
      %v614 = vpop.permute.xlu0 %613
      %633 = vrot.lane.b32.xlu0 %v248, 24
      %v634 = vpop.permute.xlu0 %633
      %635 = vrot.lane.b32.xlu0 %v249, 24
      %v636 = vpop.permute.xlu0 %635
      %637 = vrot.lane.b32.xlu0 %v251, 24
      %v638 = vpop.permute.xlu0 %637
      %639 = vrot.lane.b32.xlu0 %v252, 24
      %v640 = vpop.permute.xlu0 %639
      %641 = vrot.lane.b32.xlu0 %v254, 24
      %v642 = vpop.permute.xlu0 %641
      %643 = vrot.lane.b32.xlu0 %v255, 24
      %v644 = vpop.permute.xlu0 %643
      %645 = vrot.lane.b32.xlu0 %v257, 24
      %v646 = vpop.permute.xlu0 %645
      %647 = vrot.lane.b32.xlu0 %v258, 24
      %v648 = vpop.permute.xlu0 %647
      %649 = vrot.lane.b32.xlu0 %v260, 24
      %v650 = vpop.permute.xlu0 %649
      %651 = vrot.lane.b32.xlu0 %v261, 24
      %v652 = vpop.permute.xlu0 %651
      %653 = vrot.lane.b32.xlu0 %v263, 24
      %v654 = vpop.permute.xlu0 %653
      %655 = vrot.lane.b32.xlu0 %v264, 24
      %v656 = vpop.permute.xlu0 %655
      %657 = vrot.lane.b32.xlu0 %v266, 24
      %v658 = vpop.permute.xlu0 %657
      %659 = vrot.lane.b32.xlu0 %v267, 24
      %v660 = vpop.permute.xlu0 %659
      %661 = vrot.lane.b32.xlu0 %v269, 24
      %v662 = vpop.permute.xlu0 %661
      %663 = vrot.lane.b32.xlu0 %v270, 24
      %v664 = vpop.permute.xlu0 %663
      %v682 = vrot.slane %v269, 1
      %v683 = vrot.slane %v270, 1
      %v684 = vsel %vm296, %v682, %v683
      %v685 = vrot.slane %v271, 1
      %v686 = vsel %vm296, %v683, %v685
      %687 = vrot.lane.b32.xlu0 %v309, 28
      %v688 = vpop.permute.xlu0 %687
      %689 = vrot.lane.b32.xlu0 %v311, 28
      %v690 = vpop.permute.xlu0 %689
      %691 = vrot.lane.b32.xlu0 %v314, 28
      %v692 = vpop.permute.xlu0 %691
      %693 = vrot.lane.b32.xlu0 %v316, 28
      %v694 = vpop.permute.xlu0 %693
      %695 = vrot.lane.b32.xlu0 %v319, 28
      %v696 = vpop.permute.xlu0 %695
      %697 = vrot.lane.b32.xlu0 %v321, 28
      %v698 = vpop.permute.xlu0 %697
      %699 = vrot.lane.b32.xlu0 %v324, 28
      %v700 = vpop.permute.xlu0 %699
      %701 = vrot.lane.b32.xlu0 %v326, 28
      %v702 = vpop.permute.xlu0 %701
      %703 = vrot.lane.b32.xlu0 %v329, 28
      %v704 = vpop.permute.xlu0 %703
      %705 = vrot.lane.b32.xlu0 %v331, 28
      %v706 = vpop.permute.xlu0 %705
      %707 = vrot.lane.b32.xlu0 %v334, 28
      %v708 = vpop.permute.xlu0 %707
      %709 = vrot.lane.b32.xlu0 %v336, 28
      %v710 = vpop.permute.xlu0 %709
      %711 = vrot.lane.b32.xlu0 %v527, 28
      %v712 = vpop.permute.xlu0 %711
      %713 = vrot.lane.b32.xlu0 %v529, 28
      %v714 = vpop.permute.xlu0 %713
      %715 = vrot.lane.b32.xlu0 %v684, 28
      %v716 = vpop.permute.xlu0 %715
      %717 = vrot.lane.b32.xlu0 %v686, 28
      %v718 = vpop.permute.xlu0 %717
      %v735 = vrot.slane %v269, 2
      %v736 = vrot.slane %v270, 2
      %v737 = vsel %vm385, %v735, %v736
      %v738 = vrot.slane %v271, 2
      %v739 = vsel %vm385, %v736, %v738
      %740 = vrot.lane.b32.xlu0 %v398, 32
      %v741 = vpop.permute.xlu0 %740
      %742 = vrot.lane.b32.xlu0 %v400, 32
      %v743 = vpop.permute.xlu0 %742
      %744 = vrot.lane.b32.xlu0 %v403, 32
      %v745 = vpop.permute.xlu0 %744
      %746 = vrot.lane.b32.xlu0 %v405, 32
      %v747 = vpop.permute.xlu0 %746
      %748 = vrot.lane.b32.xlu0 %v408, 32
      %v749 = vpop.permute.xlu0 %748
      %750 = vrot.lane.b32.xlu0 %v410, 32
      %v751 = vpop.permute.xlu0 %750
      %752 = vrot.lane.b32.xlu0 %v413, 32
      %v753 = vpop.permute.xlu0 %752
      %754 = vrot.lane.b32.xlu0 %v415, 32
      %v755 = vpop.permute.xlu0 %754
      %756 = vrot.lane.b32.xlu0 %v418, 32
      %v757 = vpop.permute.xlu0 %756
      %758 = vrot.lane.b32.xlu0 %v420, 32
      %v759 = vpop.permute.xlu0 %758
      %760 = vrot.lane.b32.xlu0 %v423, 32
      %v761 = vpop.permute.xlu0 %760
      %762 = vrot.lane.b32.xlu0 %v425, 32
      %v763 = vpop.permute.xlu0 %762
      %764 = vrot.lane.b32.xlu0 %v580, 32
      %v765 = vpop.permute.xlu0 %764
      %766 = vrot.lane.b32.xlu0 %v582, 32
      %v767 = vpop.permute.xlu0 %766
      %768 = vrot.lane.b32.xlu0 %v737, 32
      %v769 = vpop.permute.xlu0 %768
      %770 = vrot.lane.b32.xlu0 %v739, 32
      %v771 = vpop.permute.xlu0 %770
      %vm788 = vcmask 31744
      %v789 = vsel %vm788, %v242, %v338
      %v790 = vsel %vm788, %v243, %v340
      %v791 = vsel %vm788, %v245, %v342
      %v792 = vsel %vm788, %v246, %v344
      %v793 = vsel %vm788, %v248, %v346
      %v794 = vsel %vm788, %v249, %v348
      %v795 = vsel %vm788, %v251, %v350
      %v796 = vsel %vm788, %v252, %v352
      %v797 = vsel %vm788, %v254, %v354
      %v798 = vsel %vm788, %v255, %v356
      %v799 = vsel %vm788, %v257, %v358
      %v800 = vsel %vm788, %v258, %v360
      %v801 = vsel %vm788, %v260, %v362
      %v802 = vsel %vm788, %v261, %v364
      %v803 = vsel %vm788, %v263, %v366
      %v804 = vsel %vm788, %v264, %v368
      %vm805 = vcmask 64512
      %v806 = vsel %vm805, %v789, %v427
      %v807 = vsel %vm805, %v790, %v429
      %v808 = vsel %vm805, %v791, %v431
      %v809 = vsel %vm805, %v792, %v433
      %v810 = vsel %vm805, %v793, %v435
      %v811 = vsel %vm805, %v794, %v437
      %v812 = vsel %vm805, %v795, %v439
      %v813 = vsel %vm805, %v796, %v441
      %v814 = vsel %vm805, %v797, %v443
      %v815 = vsel %vm805, %v798, %v445
      %v816 = vsel %vm805, %v799, %v447
      %v817 = vsel %vm805, %v800, %v449
      %v818 = vsel %vm805, %v801, %v451
      %v819 = vsel %vm805, %v802, %v453
      %v820 = vsel %vm805, %v803, %v455
      %v821 = vsel %vm805, %v804, %v457
      %vm822 = vcmask 97280
      %v823 = vsel %vm822, %v806, %v477
      %v824 = vsel %vm822, %v807, %v479
      %v825 = vsel %vm822, %v808, %v481
      %v826 = vsel %vm822, %v809, %v483
      %v827 = vsel %vm822, %v810, %v485
      %v828 = vsel %vm822, %v811, %v487
      %v829 = vsel %vm822, %v812, %v489
      %v830 = vsel %vm822, %v813, %v491
      %v831 = vsel %vm822, %v814, %v493
      %v832 = vsel %vm822, %v815, %v495
      %v833 = vsel %vm822, %v816, %v497
      %v834 = vsel %vm822, %v817, %v499
      %v835 = vsel %vm822, %v818, %v501
      %v836 = vsel %vm822, %v819, %v503
      %v837 = vsel %vm822, %v820, %v505
      %v838 = vsel %vm822, %v821, %v507
      %vm839 = vcmask 130048
      %v840 = vsel %vm839, %v823, %v531
      %v841 = vsel %vm839, %v824, %v533
      %v842 = vsel %vm839, %v825, %v535
      %v843 = vsel %vm839, %v826, %v537
      %v844 = vsel %vm839, %v827, %v539
      %v845 = vsel %vm839, %v828, %v541
      %v846 = vsel %vm839, %v829, %v543
      %v847 = vsel %vm839, %v830, %v545
      %v848 = vsel %vm839, %v831, %v547
      %v849 = vsel %vm839, %v832, %v549
      %v850 = vsel %vm839, %v833, %v551
      %v851 = vsel %vm839, %v834, %v553
      %v852 = vsel %vm839, %v835, %v555
      %v853 = vsel %vm839, %v836, %v557
      %v854 = vsel %vm839, %v837, %v559
      %v855 = vsel %vm839, %v838, %v561
      %vm856 = vcmask 162816
      %v857 = vsel %vm856, %v840, %v584
      %v858 = vsel %vm856, %v841, %v586
      %v859 = vsel %vm856, %v842, %v588
      %v860 = vsel %vm856, %v843, %v590
      %v861 = vsel %vm856, %v844, %v592
      %v862 = vsel %vm856, %v845, %v594
      %v863 = vsel %vm856, %v846, %v596
      %v864 = vsel %vm856, %v847, %v598
      %v865 = vsel %vm856, %v848, %v600
      %v866 = vsel %vm856, %v849, %v602
      %v867 = vsel %vm856, %v850, %v604
      %v868 = vsel %vm856, %v851, %v606
      %v869 = vsel %vm856, %v852, %v608
      %v870 = vsel %vm856, %v853, %v610
      %v871 = vsel %vm856, %v854, %v612
      %v872 = vsel %vm856, %v855, %v614
      %vm873 = vcmask 195584
      %v874 = vsel %vm873, %v857, %v634
      %v875 = vsel %vm873, %v858, %v636
      %v876 = vsel %vm873, %v859, %v638
      %v877 = vsel %vm873, %v860, %v640
      %v878 = vsel %vm873, %v861, %v642
      %v879 = vsel %vm873, %v862, %v644
      %v880 = vsel %vm873, %v863, %v646
      %v881 = vsel %vm873, %v864, %v648
      %v882 = vsel %vm873, %v865, %v650
      %v883 = vsel %vm873, %v866, %v652
      %v884 = vsel %vm873, %v867, %v654
      %v885 = vsel %vm873, %v868, %v656
      %v886 = vsel %vm873, %v869, %v658
      %v887 = vsel %vm873, %v870, %v660
      %v888 = vsel %vm873, %v871, %v662
      %v889 = vsel %vm873, %v872, %v664
      %vm890 = vcmask 228352
      %v891 = vsel %vm890, %v874, %v688
      %v892 = vsel %vm890, %v875, %v690
      %v893 = vsel %vm890, %v876, %v692
      %v894 = vsel %vm890, %v877, %v694
      %v895 = vsel %vm890, %v878, %v696
      %v896 = vsel %vm890, %v879, %v698
      %v897 = vsel %vm890, %v880, %v700
      %v898 = vsel %vm890, %v881, %v702
      %v899 = vsel %vm890, %v882, %v704
      %v900 = vsel %vm890, %v883, %v706
      %v901 = vsel %vm890, %v884, %v708
      %v902 = vsel %vm890, %v885, %v710
      %v903 = vsel %vm890, %v886, %v712
      %v904 = vsel %vm890, %v887, %v714
      %v905 = vsel %vm890, %v888, %v716
      %v906 = vsel %vm890, %v889, %v718
      %vm907 = vcmask 261120
      %v908 = vsel %vm907, %v891, %v741
      %v909 = vsel %vm907, %v892, %v743
      %v910 = vsel %vm907, %v893, %v745
      %v911 = vsel %vm907, %v894, %v747
      %v912 = vsel %vm907, %v895, %v749
      %v913 = vsel %vm907, %v896, %v751
      %v914 = vsel %vm907, %v897, %v753
      %v915 = vsel %vm907, %v898, %v755
      %v916 = vsel %vm907, %v899, %v757
      %v917 = vsel %vm907, %v900, %v759
      %v918 = vsel %vm907, %v901, %v761
      %v919 = vsel %vm907, %v902, %v763
      %v920 = vsel %vm907, %v903, %v765
      %v921 = vsel %vm907, %v904, %v767
      %v922 = vsel %vm907, %v905, %v769
      %v923 = vsel %vm907, %v906, %v771
      %v924 = vld [vmem:[%s1] sm:$0xff]
      %v925 = vld [vmem:[%s1 + $0x8] sm:$0xff]
      %v926 = vld [vmem:[%s1 + $0x10] sm:$0xff]
      %v927 = vld [vmem:[%s1 + $0x18] sm:$0xff]
      %v928 = vld [vmem:[%s1 + $0x20] sm:$0xf]
      %v929 = vld [vmem:[%s2] sm:$0x1]
      %v931 = vlaneseq
      %v932 = vshrl.u32 %v931, 7
      %v933 = vsub.s32 0, %v932
      %v934 = vrot.slane %v929, %v933
      %vm936 = vcmask 293888
      %v938 = vsel %vm936, %v908, 0
      %v941 = vsel %vm936, %v909, 0
      %v944 = vsel %vm936, %v910, 0
      %v947 = vsel %vm936, %v911, 0
      %v950 = vsel %vm936, %v912, 0
      %v953 = vsel %vm936, %v913, 0
      %v956 = vsel %vm936, %v914, 0
      %v959 = vsel %vm936, %v915, 0
      %v962 = vsel %vm936, %v916, 0
      %v965 = vsel %vm936, %v917, 0
      %v968 = vsel %vm936, %v918, 0
      %v971 = vsel %vm936, %v919, 0
      %v974 = vsel %vm936, %v920, 0
      %v977 = vsel %vm936, %v921, 0
      %v980 = vsel %vm936, %v922, 0
      %v983 = vsel %vm936, %v923, 0
      %vm985 = vcmask 1043456
      %v987 = vsel %vm985, %v928, 0
      %989 = vmatprep.subr.mxu0 0.0
      %990 = vmatpush1.msra.mxu0 0.0
      %991 = vmatprep.subr.mxu0 0.0
      %992 = vmatpush1.msra.mxu0 0.0
      %993 = vmatprep.subr.mxu0 0.0
      %994 = vmatpush1.msra.mxu0 0.0
      %995 = vmatprep.subr.mxu0 0.0
      %996 = vmatpush1.msra.mxu0 0.0
      %997 = vmatprep.subr.mxu0 0.0
      %998 = vmatpush1.msra.mxu0 0.0
      %999 = vmatprep.subr.mxu0 0.0
      %1000 = vmatpush1.msra.mxu0 0.0
      %1001 = vmatprep.subr.mxu0 0.0
      %1002 = vmatpush1.msra.mxu0 0.0
      %1003 = vmatprep.subr.mxu0 0.0
      %1004 = vmatpush1.msra.mxu0 0.0
      %1005 = vmatprep.subr.mxu0 0.0
      %1006 = vmatpush1.msra.mxu0 0.0
      %1007 = vmatprep.subr.mxu0 0.0
      %1008 = vmatpush1.msra.mxu0 0.0
      %1009 = vmatprep.subr.mxu0 0.0
      %1010 = vmatpush1.msra.mxu0 0.0
      %1011 = vmatprep.subr.mxu0 0.0
      %1012 = vmatpush1.msra.mxu0 %v987
      %1013 = vmatprep.subr.mxu0 0.0
      %1014 = vmatpush1.msra.mxu0 %v927
      %1015 = vmatprep.subr.mxu0 0.0
      %1016 = vmatpush1.msra.mxu0 %v926
      %1017 = vmatprep.subr.mxu0 0.0
      %1018 = vmatpush1.msra.mxu0 %v925
      %1019 = vmatprep.subr.mxu0 0.0
      %1020 = vmatpush1.msra.mxu0 %v924
      %1021 = vmatprep.subr.mxu0 0.0
      %1022 = vmatpush2.msra.mxu0 0.0
      %1023 = vmatprep.subr.mxu0 0.0
      %1024 = vmatpush2.msra.mxu0 0.0
      %1025 = vmatprep.subr.mxu0 0.0
      %1026 = vmatpush2.msra.mxu0 0.0
      %1027 = vmatprep.subr.mxu0 0.0
      %1028 = vmatpush2.msra.mxu0 0.0
      %1029 = vmatprep.subr.mxu0 0.0
      %1030 = vmatpush2.msra.mxu0 0.0
      %1031 = vmatprep.subr.mxu0 0.0
      %1032 = vmatpush2.msra.mxu0 0.0
      %1033 = vmatprep.subr.mxu0 0.0
      %1034 = vmatpush2.msra.mxu0 0.0
      %1035 = vmatprep.subr.mxu0 0.0
      %1036 = vmatpush2.msra.mxu0 0.0
      %1037 = vmatprep.subr.mxu0 0.0
      %1038 = vmatpush2.msra.mxu0 0.0
      %1039 = vmatprep.subr.mxu0 0.0
      %1040 = vmatpush2.msra.mxu0 0.0
      %1041 = vmatprep.subr.mxu0 0.0
      %1042 = vmatpush2.msra.mxu0 0.0
      %1043 = vmatprep.subr.mxu0 0.0
      %1044 = vmatpush2.msra.mxu0 0.0
      %1045 = vmatprep.subr.mxu0 0.0
      %1046 = vmatpush2.msra.mxu0 0.0
      %1047 = vmatprep.subr.mxu0 0.0
      %1048 = vmatpush2.msra.mxu0 0.0
      %1049 = vmatprep.subr.mxu0 0.0
      %1050 = vmatpush2.msra.mxu0 0.0
      %1051 = vmatprep.subr.mxu0 0.0
      %1052 = vmatpush2.msra.mxu0 0.0
      %1053 = vmatprep.mubr.f32.mxu0 0.0
      %1054 = vmatmul.mubr.f32.gmra.mxu0 %v938
      %v1055 = vpop.f32.mrf.mxu0
      %v1056 = vadd.f32 %v934, %v1055
      %v1057 = vpop.f32.mrf.mxu0
      %1058 = vmatprep.mubr.f32.mxu0 0.0
      %1059 = vmatmul.mubr.f32.gmra.mxu0 %v941
      %v1060 = vpop.f32.mrf.mxu0
      %v1061 = vadd.f32 %v934, %v1060
      %v1062 = vpop.f32.mrf.mxu0
      %1063 = vmatprep.mubr.f32.mxu0 0.0
      %1064 = vmatmul.mubr.f32.gmra.mxu0 %v944
      %v1065 = vpop.f32.mrf.mxu0
      %v1066 = vadd.f32 %v934, %v1065
      %v1067 = vpop.f32.mrf.mxu0
      %1068 = vmatprep.mubr.f32.mxu0 0.0
      %1069 = vmatmul.mubr.f32.gmra.mxu0 %v947
      %v1070 = vpop.f32.mrf.mxu0
      %v1071 = vadd.f32 %v934, %v1070
      %v1072 = vpop.f32.mrf.mxu0
      %1073 = vmatprep.mubr.f32.mxu0 0.0
      %1074 = vmatmul.mubr.f32.gmra.mxu0 %v950
      %v1075 = vpop.f32.mrf.mxu0
      %v1076 = vadd.f32 %v934, %v1075
      %v1077 = vpop.f32.mrf.mxu0
      %1078 = vmatprep.mubr.f32.mxu0 0.0
      %1079 = vmatmul.mubr.f32.gmra.mxu0 %v953
      %v1080 = vpop.f32.mrf.mxu0
      %v1081 = vadd.f32 %v934, %v1080
      %v1082 = vpop.f32.mrf.mxu0
      %1083 = vmatprep.mubr.f32.mxu0 0.0
      %1084 = vmatmul.mubr.f32.gmra.mxu0 %v956
      %v1085 = vpop.f32.mrf.mxu0
      %v1086 = vadd.f32 %v934, %v1085
      %v1087 = vpop.f32.mrf.mxu0
      %1088 = vmatprep.mubr.f32.mxu0 0.0
      %1089 = vmatmul.mubr.f32.gmra.mxu0 %v959
      %v1090 = vpop.f32.mrf.mxu0
      %v1091 = vadd.f32 %v934, %v1090
      %v1092 = vpop.f32.mrf.mxu0
      %1093 = vmatprep.mubr.f32.mxu0 0.0
      %1094 = vmatmul.mubr.f32.gmra.mxu0 %v962
      %v1095 = vpop.f32.mrf.mxu0
      %v1096 = vadd.f32 %v934, %v1095
      %v1097 = vpop.f32.mrf.mxu0
      %1098 = vmatprep.mubr.f32.mxu0 0.0
      %1099 = vmatmul.mubr.f32.gmra.mxu0 %v965
      %v1100 = vpop.f32.mrf.mxu0
      %v1101 = vadd.f32 %v934, %v1100
      %v1102 = vpop.f32.mrf.mxu0
      %1103 = vmatprep.mubr.f32.mxu0 0.0
      %1104 = vmatmul.mubr.f32.gmra.mxu0 %v968
      %v1105 = vpop.f32.mrf.mxu0
      %v1106 = vadd.f32 %v934, %v1105
      %v1107 = vpop.f32.mrf.mxu0
      %1108 = vmatprep.mubr.f32.mxu0 0.0
      %1109 = vmatmul.mubr.f32.gmra.mxu0 %v971
      %v1110 = vpop.f32.mrf.mxu0
      %v1111 = vadd.f32 %v934, %v1110
      %v1112 = vpop.f32.mrf.mxu0
      %1113 = vmatprep.mubr.f32.mxu0 0.0
      %1114 = vmatmul.mubr.f32.gmra.mxu0 %v974
      %v1115 = vpop.f32.mrf.mxu0
      %v1116 = vadd.f32 %v934, %v1115
      %v1117 = vpop.f32.mrf.mxu0
      %1118 = vmatprep.mubr.f32.mxu0 0.0
      %1119 = vmatmul.mubr.f32.gmra.mxu0 %v977
      %v1120 = vpop.f32.mrf.mxu0
      %v1121 = vadd.f32 %v934, %v1120
      %v1122 = vpop.f32.mrf.mxu0
      %1123 = vmatprep.mubr.f32.mxu0 0.0
      %1124 = vmatmul.mubr.f32.gmra.mxu0 %v980
      %v1125 = vpop.f32.mrf.mxu0
      %v1126 = vadd.f32 %v934, %v1125
      %v1127 = vpop.f32.mrf.mxu0
      %1128 = vmatprep.mubr.f32.mxu0 0.0
      %1129 = vmatmul.mubr.f32.gmra.mxu0 %v983
      %v1130 = vpop.f32.mrf.mxu0
      %v1131 = vadd.f32 %v934, %v1130
      %v1132 = vpop.f32.mrf.mxu0
      %1133 = vdwg.mxu0
      %1134 = vst [vmem:[%s235] sm:$0xff] %v1056
      %1135 = vst [vmem:[%s235 + $0x8] sm:$0xff] %v1061
      %1136 = vst [vmem:[%s235 + $0x10] sm:$0xff] %v1066
      %1137 = vst [vmem:[%s235 + $0x18] sm:$0xff] %v1071
      %1138 = vst [vmem:[%s235 + $0x20] sm:$0xff] %v1076
      %1139 = vst [vmem:[%s235 + $0x28] sm:$0xff] %v1081
      %1140 = vst [vmem:[%s235 + $0x30] sm:$0xff] %v1086
      %1141 = vst [vmem:[%s235 + $0x38] sm:$0xff] %v1091
      %1142 = vst [vmem:[%s235 + $0x40] sm:$0xff] %v1096
      %1143 = vst [vmem:[%s235 + $0x48] sm:$0xff] %v1101
      %1144 = vst [vmem:[%s235 + $0x50] sm:$0xff] %v1106
      %1145 = vst [vmem:[%s235 + $0x58] sm:$0xff] %v1111
      %1146 = vst [vmem:[%s235 + $0x60] sm:$0xff] %v1116
      %1147 = vst [vmem:[%s235 + $0x68] sm:$0xff] %v1121
      %1148 = vst [vmem:[%s235 + $0x70] sm:$0xff] %v1126
      %1149 = vst [vmem:[%s235 + $0x78] sm:$0xff] %v1131
      %v1150 = vadd.f32 %v1056, %v1061
      %v1151 = vadd.f32 %v1150, %v1066
      %v1152 = vadd.f32 %v1151, %v1071
      %v1153 = vadd.f32 %v1152, %v1076
      %v1154 = vadd.f32 %v1153, %v1081
      %v1155 = vadd.f32 %v1154, %v1086
      %v1156 = vadd.f32 %v1155, %v1091
      %v1157 = vadd.f32 %v1156, %v1096
      %v1158 = vadd.f32 %v1157, %v1101
      %v1159 = vadd.f32 %v1158, %v1106
      %v1160 = vadd.f32 %v1159, %v1111
      %v1161 = vadd.f32 %v1160, %v1116
      %v1162 = vadd.f32 %v1161, %v1121
      %v1163 = vadd.f32 %v1162, %v1126
      %v1164 = vadd.f32 %v1163, %v1131
      %v1165 = vrot.slane %v1164, 4
      %v1166 = vadd.f32 %v1164, %v1165
      %v1167 = vrot.slane %v1166, 2
      %v1168 = vadd.f32 %v1166, %v1167
      %v1169 = vrot.slane %v1168, 1
      %v1170 = vadd.f32 %v1168, %v1169
      %v1171 = vrcp.pop 128.0
      %v1172 = vmul.f32 %v1170, %v1171
      %1173 = vst [vmem:[%s238] sm:$0x1] %v1172
      %v1174 = vsub.f32 %v1056, %v1172
      %v1175 = vsub.f32 %v1061, %v1172
      %v1176 = vsub.f32 %v1066, %v1172
      %v1177 = vsub.f32 %v1071, %v1172
      %v1178 = vsub.f32 %v1076, %v1172
      %v1179 = vsub.f32 %v1081, %v1172
      %v1180 = vsub.f32 %v1086, %v1172
      %v1181 = vsub.f32 %v1091, %v1172
      %v1182 = vsub.f32 %v1096, %v1172
      %v1183 = vsub.f32 %v1101, %v1172
      %v1184 = vsub.f32 %v1106, %v1172
      %v1185 = vsub.f32 %v1111, %v1172
      %v1186 = vsub.f32 %v1116, %v1172
      %v1187 = vsub.f32 %v1121, %v1172
      %v1188 = vsub.f32 %v1126, %v1172
      %v1189 = vsub.f32 %v1131, %v1172
      %v1190 = vmul.f32 %v1174, %v1174
      %v1191 = vmul.f32 %v1175, %v1175
      %v1192 = vmul.f32 %v1176, %v1176
      %v1193 = vmul.f32 %v1177, %v1177
      %v1194 = vmul.f32 %v1178, %v1178
      %v1195 = vmul.f32 %v1179, %v1179
      %v1196 = vmul.f32 %v1180, %v1180
      %v1197 = vmul.f32 %v1181, %v1181
      %v1198 = vmul.f32 %v1182, %v1182
      %v1199 = vmul.f32 %v1183, %v1183
      %v1200 = vmul.f32 %v1184, %v1184
      %v1201 = vmul.f32 %v1185, %v1185
      %v1202 = vmul.f32 %v1186, %v1186
      %v1203 = vmul.f32 %v1187, %v1187
      %v1204 = vmul.f32 %v1188, %v1188
      %v1205 = vmul.f32 %v1189, %v1189
      %v1206 = vadd.f32 %v1190, %v1191
      %v1207 = vadd.f32 %v1206, %v1192
      %v1208 = vadd.f32 %v1207, %v1193
      %v1209 = vadd.f32 %v1208, %v1194
      %v1210 = vadd.f32 %v1209, %v1195
      %v1211 = vadd.f32 %v1210, %v1196
      %v1212 = vadd.f32 %v1211, %v1197
      %v1213 = vadd.f32 %v1212, %v1198
      %v1214 = vadd.f32 %v1213, %v1199
      %v1215 = vadd.f32 %v1214, %v1200
      %v1216 = vadd.f32 %v1215, %v1201
      %v1217 = vadd.f32 %v1216, %v1202
      %v1218 = vadd.f32 %v1217, %v1203
      %v1219 = vadd.f32 %v1218, %v1204
      %v1220 = vadd.f32 %v1219, %v1205
      %v1221 = vrot.slane %v1220, 4
      %v1222 = vadd.f32 %v1220, %v1221
      %v1223 = vrot.slane %v1222, 2
      %v1224 = vadd.f32 %v1222, %v1223
      %v1225 = vrot.slane %v1224, 1
      %v1226 = vadd.f32 %v1224, %v1225
      %1227 = vst [vmem:[%s241] sm:$0x1] %v1226
      %p1228 = scmp.lt.s32.totalorder %s17, 3
      %s1229 = scalar_select %p1228, %s17, 3
      %s1230 = smul.addr %s1229, 16
      %s1231 = smul.addr %s1230, 8
      %s1232 = scalar_lea.vmem %s3, %s1231
      %p1233 = scmp.lt.s32.totalorder %s17, 3
      %s1234 = scalar_select %p1233, %s17, 3
      %s1235 = scalar_lea.vmem %s4, %s1234
      %p1236 = scmp.lt.s32.totalorder %s17, 3
      %s1237 = scalar_select %p1236, %s17, 3
      %s1238 = scalar_lea.vmem %s5, %s1237
      // Predicated region
      $region33: #{decoder_block.1} parent=31 // pred_check
        %p1239 = pneg %p103
      $region34: #{decoder_block.1} parent=31 // pred_check_branch
        %1241 = sbr.rel (%p1239) target = $region36
      $region35: #{decoder_block.1} parent=31 // pred_region
        _
      $region36: #{decoder_block.1} parent=31 // pred_fallthru
        _
      // Predicated region
      $region37: #{decoder_block.1} parent=31 // pred_check
        %p1242 = pneg %p129
      $region38: #{decoder_block.1} parent=31 // pred_check_branch
        %1244 = sbr.rel (%p1242) target = $region40
      $region39: #{decoder_block.1} parent=31 // pred_region
        _
      $region40: #{decoder_block.1} parent=31 // pred_fallthru
        _
      // Predicated region
      $region41: #{decoder_block.1} parent=31 // pred_check
        %p1245 = pneg %p155
      $region42: #{decoder_block.1} parent=31 // pred_check_branch
        %1247 = sbr.rel (%p1245) target = $region44
      $region43: #{decoder_block.1} parent=31 // pred_region
        _
      $region44: #{decoder_block.1} parent=31 // pred_fallthru
        _
    $region32: #{decoder_block.1} parent=5 // pred_fallthru
      _
    %p1248 = scmp.le.s32.totalorder 2, %s12
    // Predicated region
    $region45: #{decoder_block.1} parent=5 // pred_check
      %p1249 = pneg %p1248
    $region46: #{decoder_block.1} parent=5 // pred_check_branch
      %1251 = sbr.rel (%p1249) target = $region48
    $region47: #{decoder_block.1} parent=5 // pred_region
      %s1252 = ssub.s32 %s12, 2
      // Predicated region
      $region49: #{decoder_block.1} parent=47 // pred_check
        %p1253 = pneg %p109
      $region50: #{decoder_block.1} parent=47 // pred_check_branch
        %1255 = sbr.rel (%p1253) target = $region52
      $region51: #{decoder_block.1} parent=47 // pred_region
        %p1256 = scmp.lt.s32.totalorder %s18, 3
        %s1257 = scalar_select %p1256, %s18, 3
        %s1258 = smul.addr %s1257, 16
        %s1259 = smul.addr %s1258, 8
        %s1260 = scalar_lea.vmem %s3, %s1259
      $region52: #{decoder_block.1} parent=47 // pred_fallthru
        _
      // Predicated region
      $region53: #{decoder_block.1} parent=47 // pred_check
        %p1261 = pneg %p135
      $region54: #{decoder_block.1} parent=47 // pred_check_branch
        %1263 = sbr.rel (%p1261) target = $region56
      $region55: #{decoder_block.1} parent=47 // pred_region
        %p1264 = scmp.lt.s32.totalorder %s18, 3
        %s1265 = scalar_select %p1264, %s18, 3
        %s1266 = scalar_lea.vmem %s4, %s1265
      $region56: #{decoder_block.1} parent=47 // pred_fallthru
        _
      // Predicated region
      $region57: #{decoder_block.1} parent=47 // pred_check
        %p1267 = pneg %p161
      $region58: #{decoder_block.1} parent=47 // pred_check_branch
        %1269 = sbr.rel (%p1267) target = $region60
      $region59: #{decoder_block.1} parent=47 // pred_region
        %p1270 = scmp.lt.s32.totalorder %s18, 3
        %s1271 = scalar_select %p1270, %s18, 3
        %s1272 = scalar_lea.vmem %s5, %s1271
      $region60: #{decoder_block.1} parent=47 // pred_fallthru
        _
    $region48: #{decoder_block.1} parent=5 // pred_fallthru
      _
  $region6: #{decoder_block.1} parent=0 // loop_footer
    %s16 = sadd.s32 1, %s12
  $region7: #{decoder_block.1} parent=0 // loop_footer_branch
    %11 = sbr.rel target = $region3
  $region8: #{decoder_block.1} parent=0 // loop_exit
    _

</llo_original>
